<compile_context>
chip_gen: v7x
topology: tpu7x:2x2x1
jax: 0.10.0
libtpu: 0.0.40
codegen_flags: <defaults>
</compile_context>

<pallas_src>
import jax
import jax.numpy as jnp
from jax.experimental import pallas as pl
from jax.experimental.pallas import tpu as pltpu


def gcn_kernel(x2_ref, a_ref, x_ref, b2_ref, o_ref):
    # x2_ref: (C, L)   a_ref: (L, TL)   x_ref: (C, TL)   b2_ref: (C, 1)   o_ref: (C, TL)
    # Single MXU pass: (W2 @ X) @ A_block, then fused bias + relu + residual.
    y = jnp.dot(x2_ref[...], a_ref[...], preferred_element_type=jnp.float32)
    y = y + b2_ref[...]
    o_ref[...] = (jnp.maximum(y, 0.0) + x_ref[...]).astype(o_ref.dtype)


def _pick_col_tile(l):
    """Largest lane tile dividing L that keeps double-buffered aj comfortably in VMEM."""
    for tl in (1024, 512, 256, 128):
        if l % tl == 0 and 2 * l * tl * 4 <= 24 * 1024 * 1024:
            return tl
    return l  # fallback: full lane extent (satisfies the (8,128) rule trivially)


def gcn_forward(seg, aj, w2, b2, *, tl=None):
    """seg: (N, C, H, W), aj: (N, L, L), w2: (C, C), b2: (C,) -> (N, C, L)."""
    n, c, h, w = seg.shape
    l = h * w
    x = seg.reshape(n, c, l)

    # Fuse the 1x1 conv weight into X (associativity): relu(W2@(X@A)+b2) == relu((W2@X)@A+b2).
    # This (C,C)@(C,L) matmul per batch is negligible next to the (C,L)@(L,L) one.
    x2 = jnp.einsum("oc,ncl->nol", w2, x).astype(jnp.float32)
    b2_col = b2.reshape(c, 1).astype(jnp.float32)

    if tl is None:
        tl = _pick_col_tile(l)
    assert l % tl == 0
    n_col = l // tl

    # VMEM budget: double-buffered aj column tile + X/out tiles + resident X2 + headroom.
    needed = 2 * 4 * (l * tl + 2 * c * tl + c * l) + (1 << 20)
    vmem_limit = int(min(max(needed, 16 << 20), 48 << 20))

    out = pl.pallas_call(
        gcn_kernel,
        out_shape=jax.ShapeDtypeStruct((n, c, l), seg.dtype),
        grid_spec=pltpu.PrefetchScalarGridSpec(
            num_scalar_prefetch=0,
            grid=(n, n_col),
            in_specs=[
                # X2 = W2 @ X : full per-batch slice, resident across column tiles.
                pl.BlockSpec((None, c, l), lambda b, j: (b, 0, 0)),
                # aj column tile (the dominant HBM traffic).
                pl.BlockSpec((None, l, tl), lambda b, j: (b, 0, j)),
                # X column tile for the residual add.
                pl.BlockSpec((None, c, tl), lambda b, j: (b, 0, j)),
                # conv2 bias (shared).
                pl.BlockSpec((c, 1), lambda b, j: (0, 0)),
            ],
            out_specs=pl.BlockSpec((None, c, tl), lambda b, j: (b, 0, j)),
        ),
        compiler_params=pltpu.CompilerParams(
            dimension_semantics=("parallel", "parallel"),
            vmem_limit_bytes=vmem_limit,
        ),
    )(x2, aj, x, b2_col)
    return out


def gcn_reference(seg, aj, w2, b2):
    n, c, h, w = seg.shape
    x = seg.reshape(n, c, h * w)
    s = jnp.einsum("ncl,nlk->nck", x, aj)
    y = jnp.maximum(jnp.einsum("oc,nck->nok", w2, s) + b2[None, :, None], 0.0)
    return y + x


if __name__ == "__main__":
    key = jax.random.PRNGKey(0)
    k1, k2, k3, k4 = jax.random.split(key, 4)

    # Small shapes: batch=2, num_state (channels)=8, spatial 16x16 -> L = num_node = 256
    N, C, H, W = 2, 8, 16, 16
    L = H * W

    seg = jax.random.normal(k1, (N, C, H, W), dtype=jnp.float32)
    aj = jax.random.normal(k2, (N, L, L), dtype=jnp.float32) * 0.05

    # Deterministic Conv1d(num_state, num_state, kernel_size=1) params
    # (PyTorch-style uniform init bound 1/sqrt(fan_in)).
    bound = 1.0 / jnp.sqrt(jnp.float32(C))
    w2 = jax.random.uniform(k3, (C, C), dtype=jnp.float32, minval=-bound, maxval=bound)
    b2 = jax.random.uniform(k4, (C,), dtype=jnp.float32, minval=-bound, maxval=bound)
    # TODO(synk): conv1 (Conv1d(num_node, num_node, k=1)) is unused in the PyTorch forward.

    ref = gcn_reference(seg, aj, w2, b2)

    # Default tile (single column tile at this toy L).
    out = jax.block_until_ready(gcn_forward(seg, aj, w2, b2))
    assert out.shape == (N, C, L)
    assert jnp.allclose(out, ref, atol=1e-4, rtol=1e-4)

    # Explicit smaller tile to exercise the multi-step column-tiled grid path.
    out_tiled = jax.block_until_ready(gcn_forward(seg, aj, w2, b2, tl=128))
    assert jnp.allclose(out_tiled, ref, atol=1e-4, rtol=1e-4)

    print("KERNEL_OK")
</pallas_src>

<mosaic_0001>
module attributes {stable_mosaic.version = 11 : i64} {
  func.func @gcn_kernel(%arg0: i32, %arg1: i32, %arg2: memref<1x8x256xf32, #tpu.memory_space<vmem>>, %arg3: memref<1x256x256xf32, #tpu.memory_space<vmem>>, %arg4: memref<1x8x256xf32, #tpu.memory_space<vmem>>, %arg5: memref<8x1xf32, #tpu.memory_space<vmem>>, %arg6: memref<1x8x256xf32, #tpu.memory_space<vmem>>) attributes {dimension_semantics = [#tpu.dimension_semantics<parallel>, #tpu.dimension_semantics<parallel>], iteration_bounds = array<i64: 2, 1>, scalar_prefetch = 0 : i64, scratch_operands = 0 : i64, tpu.core_type = #tpu.core_type<tc>, window_params = [{transform_indices = @transform_0, window_bounds = array<i64: 1, 8, 256>}, {transform_indices = @transform_1, window_bounds = array<i64: 1, 256, 256>}, {transform_indices = @transform_2, window_bounds = array<i64: 1, 8, 256>}, {pipeline_mode = #tpu.pipeline_mode<synchronous>, transform_indices = @transform_3, window_bounds = array<i64: 8, 1>}, {transform_indices = @transform_4, window_bounds = array<i64: 1, 8, 256>}]} {
    %c0 = arith.constant 0 : index
    %c0_0 = arith.constant 0 : index
    %c0_1 = arith.constant 0 : index
    %0 = vector.load %arg2[%c0, %c0_0, %c0_1] : memref<1x8x256xf32, #tpu.memory_space<vmem>>, vector<1x8x256xf32>
    %1 = vector.shape_cast %0 : vector<1x8x256xf32> to vector<8x256xf32>
    %c0_2 = arith.constant 0 : index
    %c0_3 = arith.constant 0 : index
    %c0_4 = arith.constant 0 : index
    %2 = vector.load %arg3[%c0_2, %c0_3, %c0_4] : memref<1x256x256xf32, #tpu.memory_space<vmem>>, vector<1x256x256xf32>
    %3 = vector.shape_cast %2 : vector<1x256x256xf32> to vector<256x256xf32>
    %cst = arith.constant dense<0.000000e+00> : vector<8x256xf32>
    %4 = tpu.matmul %1, %3, %cst {dimension_numbers = #tpu.dot_dimension_numbers<[1], [0], [0], [1], [0, 0, 1, 1], [], []>} : vector<8x256xf32>, vector<256x256xf32>, vector<8x256xf32> -> vector<8x256xf32>
    %c0_5 = arith.constant 0 : index
    %c0_6 = arith.constant 0 : index
    %5 = vector.load %arg5[%c0_5, %c0_6] : memref<8x1xf32, #tpu.memory_space<vmem>>, vector<8x1xf32>
    %6 = vector.broadcast %5 : vector<8x1xf32> to vector<8x256xf32>
    %7 = arith.addf %4, %6 : vector<8x256xf32>
    %cst_7 = arith.constant 0.000000e+00 : f32
    %8 = vector.broadcast %cst_7 : f32 to vector<8x256xf32>
    %9 = arith.maximumf %7, %8 : vector<8x256xf32>
    %c0_8 = arith.constant 0 : index
    %c0_9 = arith.constant 0 : index
    %c0_10 = arith.constant 0 : index
    %10 = vector.load %arg4[%c0_8, %c0_9, %c0_10] : memref<1x8x256xf32, #tpu.memory_space<vmem>>, vector<1x8x256xf32>
    %11 = vector.shape_cast %10 : vector<1x8x256xf32> to vector<8x256xf32>
    %12 = arith.addf %9, %11 : vector<8x256xf32>
    %c0_11 = arith.constant 0 : index
    %c0_12 = arith.constant 0 : index
    %c0_13 = arith.constant 0 : index
    %13 = vector.load %arg6[%c0_11, %c0_12, %c0_13] : memref<1x8x256xf32, #tpu.memory_space<vmem>>, vector<1x8x256xf32>
    %14 = vector.shape_cast %13 : vector<1x8x256xf32> to vector<8x256xf32>
    %15 = vector.shape_cast %12 : vector<8x256xf32> to vector<1x8x256xf32>
    tpu.vector_store %arg6[%c0_11, %c0_12, %c0_13], %15 {strides = array<i32>} : memref<1x8x256xf32, #tpu.memory_space<vmem>>, vector<1x8x256xf32>,
    return
  }
  func.func @transform_0(%arg0: i32, %arg1: i32) -> (i32, i32, i32) {
    %c0_i32 = arith.constant 0 : i32
    %c0_i32_0 = arith.constant 0 : i32
    %c0_i32_1 = arith.constant 0 : i32
    return %arg0, %c0_i32, %c0_i32_0 : i32, i32, i32
  }
  func.func @transform_1(%arg0: i32, %arg1: i32) -> (i32, i32, i32) {
    %c0_i32 = arith.constant 0 : i32
    %c0_i32_0 = arith.constant 0 : i32
    return %arg0, %c0_i32, %arg1 : i32, i32, i32
  }
  func.func @transform_2(%arg0: i32, %arg1: i32) -> (i32, i32, i32) {
    %c0_i32 = arith.constant 0 : i32
    %c0_i32_0 = arith.constant 0 : i32
    return %arg0, %c0_i32, %arg1 : i32, i32, i32
  }
  func.func @transform_3(%arg0: i32, %arg1: i32) -> (i32, i32) {
    %c0_i32 = arith.constant 0 : i32
    %c0_i32_0 = arith.constant 0 : i32
    %c0_i32_1 = arith.constant 0 : i32
    return %c0_i32, %c0_i32_0 : i32, i32
  }
  func.func @transform_4(%arg0: i32, %arg1: i32) -> (i32, i32, i32) {
    %c0_i32 = arith.constant 0 : i32
    %c0_i32_0 = arith.constant 0 : i32
    return %arg0, %c0_i32, %arg1 : i32, i32, i32
  }
}

</mosaic_0001>

<llo_original>
// kernel: tpu_custom_call.1
$region0: #{tpu_custom_call.1}
  #allocation0 [shape = 'u32[]', space=smem, size = 0x4, offset = 0x4, fixed_abs, tag = 'smem constant byte address 0x4 - core index']
  #allocation1 [shape = 'u32[144,128]{1,0:T(1,128)}', space=vmem, size = 0x12000, scoped, tag = 'internal scratch']
  %s0 = inlined_call_operand.hbm [shape: f32[2,8,256], index: 0, kind: input, shape index: {}]
  %s1 = inlined_call_operand.hbm [shape: f32[2,256,256], index: 1, kind: input, shape index: {}]
  %s2 = inlined_call_operand.hbm [shape: f32[2,8,256], index: 2, kind: input, shape index: {}]
  %s3 = inlined_call_operand.vmem [shape: f32[8,1], index: 3, kind: input, shape index: {}]
  %s4 = inlined_call_operand.hbm [shape: f32[2,8,256], index: 4, kind: output, shape index: {}]
  %s5 = sld [smem:[#allocation0]]
  $region61: #{tpu_custom_call.1} parent=0
    _
  %s7 = ssub.s32 1, %s5
  %s8 = scalar_select 0, %s7, %s5
  $region1: #{tpu_custom_call.1} parent=0
    #allocation2 [shape = 'u8[16384]{0}', space=vmem, size = 0x4000, scoped, tag = 'input window, operand 0']
    #allocation3 [shape = 's32[2]{0}', space=sflag, size = 0x8, scoped, tag = 'scoped memory for tpu_custom_call.1']
    #allocation4 [shape = 's32[2]{0}', space=sflag, size = 0x8, scoped, tag = 'scoped memory for tpu_custom_call.1']
    #allocation5 [shape = 'u8[524288]{0}', space=vmem, size = 0x80000, scoped, tag = 'input window, operand 1']
    #allocation6 [shape = 's32[2]{0}', space=sflag, size = 0x8, scoped, tag = 'scoped memory for tpu_custom_call.1']
    #allocation7 [shape = 'u8[16384]{0}', space=vmem, size = 0x4000, scoped, tag = 'input window, operand 2']
    #allocation8 [shape = 'u8[16384]{0}', space=vmem, size = 0x4000, scoped, tag = 'output window, operand 0']
    %9 = vsyncpa [#allocation3], 0
    %s10 = scalar_lea.sflag [#allocation3], 1
    %11 = vsyncpa %s10, 0
    %12 = vsyncpa [#allocation6], 0
    %s13 = scalar_lea.sflag [#allocation6], 1
    %14 = vsyncpa %s13, 0
    %15 = vsyncpa [#allocation4], 0
    %s16 = scalar_lea.sflag [#allocation4], 1
    %17 = vsyncpa %s16, 0
    loop: start=0, step=1, limit=4
    $region2: #{tpu_custom_call.1} parent=1 // loop_pre_header
      _
    $region3: #{tpu_custom_call.1} parent=1 // loop_header
      %s19 = sphi 0, %s23
      %p20 = scmp.ge.s32.totalorder %s19, 4
      %s26 = sphi 0, %s38
      %s27 = sphi 0, %s34
      %s28 = sphi 0, %s26
      %s29 = sphi 0, %s27
      %s30 = sphi 0, %s28
      %s31 = sphi 0, %s29
      %s41 = sphi 0, %s43
      %s44 = sphi 0, %s41
      %s45 = sphi 0, %s44
      %s61 = sphi 0, %s45
      %s69 = sphi 0, %s71
      %s72 = sphi 0, %s69
      %s73 = sphi 0, %s72
      %s89 = sphi 0, %s73
      %s97 = sphi 0, %s99
      %s100 = sphi 0, %s97
      %s101 = sphi 0, %s100
      %s117 = sphi 0, %s101
      %s121 = sphi 0, %s121
      %s123 = sphi 0, %s121
      %s124 = sphi 0, %s123
      %s138 = sphi 0, %s124
      %s146 = sphi 0, %s148
      %s149 = sphi 0, %s146
      %s150 = sphi 0, %s149
      %s166 = sphi 0, %s150
    $region4: #{tpu_custom_call.1} parent=1 // loop_header_branch
      %22 = sbr.rel (%p20) target = $region8
    $region5: #{tpu_custom_call.1} parent=1 // loop_body
      %s24 = ssub.s32 %s19, 1
      %s25 = ssub.s32 %s19, 2
      %s32 = sadd.s32 1, %s27
      %p33 = scmp.ge.s32.totalorder %s32, 1
      %s34 = scalar_select %p33, 0, %s32
      %s35 = sadd.s32 1, %s26
      %s36 = scalar_select %p33, %s35, %s26
      %p37 = scmp.ge.s32.totalorder %s36, 2
      %s38 = scalar_select %p37, 0, %s36
      %s39 = ssub.s32 %s26, %s38
      %p40 = scmp.eq.s32.totalorder %s39, 0
      %s42 = sadd.s32 %s41, 1
      %s43 = scalar_select %p40, %s41, %s42
      %p46 = pneg %p40
      %p47 = scmp.eq.s32.totalorder %s19, 1
      %p48 = por %p46, %p47
      %p49 = scmp.ne.s32.totalorder %s41, %s44
      %p50 = scmp.eq.s32.totalorder %s19, 0
      %p51 = por %p49, %p50
      %p52 = scmp.ne.s32.totalorder %s41, %s44
      %p53 = scmp.eq.s32.totalorder %s24, 1
      %p54 = por %p52, %p53
      %p55 = scmp.ne.s32.totalorder %s44, %s45
      %p56 = scmp.eq.s32.totalorder %s24, 0
      %p57 = por %p55, %p56
      %p58 = scmp.ne.s32.totalorder %s44, %s45
      %p59 = scmp.eq.s32.totalorder %s25, 1
      %p60 = por %p58, %p59
      %p62 = scmp.ne.s32.totalorder %s45, %s61
      %p63 = scmp.eq.s32.totalorder %s25, 0
      %p64 = por %p62, %p63
      %s65 = ssub.s32 %s26, %s38
      %s66 = ssub.s32 %s27, %s34
      %s67 = sor.u32 %s65, %s66
      %p68 = scmp.eq.s32.totalorder %s67, 0
      %s70 = sadd.s32 %s69, 1
      %s71 = scalar_select %p68, %s69, %s70
      %p74 = pneg %p68
      %p75 = scmp.eq.s32.totalorder %s19, 1
      %p76 = por %p74, %p75
      %p77 = scmp.ne.s32.totalorder %s69, %s72
      %p78 = scmp.eq.s32.totalorder %s19, 0
      %p79 = por %p77, %p78
      %p80 = scmp.ne.s32.totalorder %s69, %s72
      %p81 = scmp.eq.s32.totalorder %s24, 1
      %p82 = por %p80, %p81
      %p83 = scmp.ne.s32.totalorder %s72, %s73
      %p84 = scmp.eq.s32.totalorder %s24, 0
      %p85 = por %p83, %p84
      %p86 = scmp.ne.s32.totalorder %s72, %s73
      %p87 = scmp.eq.s32.totalorder %s25, 1
      %p88 = por %p86, %p87
      %p90 = scmp.ne.s32.totalorder %s73, %s89
      %p91 = scmp.eq.s32.totalorder %s25, 0
      %p92 = por %p90, %p91
      %s93 = ssub.s32 %s26, %s38
      %s94 = ssub.s32 %s27, %s34
      %s95 = sor.u32 %s93, %s94
      %p96 = scmp.eq.s32.totalorder %s95, 0
      %s98 = sadd.s32 %s97, 1
      %s99 = scalar_select %p96, %s97, %s98
      %p102 = pneg %p96
      %p103 = scmp.eq.s32.totalorder %s19, 1
      %p104 = por %p102, %p103
      %p105 = scmp.ne.s32.totalorder %s97, %s100
      %p106 = scmp.eq.s32.totalorder %s19, 0
      %p107 = por %p105, %p106
      %p108 = scmp.ne.s32.totalorder %s97, %s100
      %p109 = scmp.eq.s32.totalorder %s24, 1
      %p110 = por %p108, %p109
      %p111 = scmp.ne.s32.totalorder %s100, %s101
      %p112 = scmp.eq.s32.totalorder %s24, 0
      %p113 = por %p111, %p112
      %p114 = scmp.ne.s32.totalorder %s100, %s101
      %p115 = scmp.eq.s32.totalorder %s25, 1
      %p116 = por %p114, %p115
      %p118 = scmp.ne.s32.totalorder %s101, %s117
      %p119 = scmp.eq.s32.totalorder %s25, 0
      %p120 = por %p118, %p119
      %s122 = sadd.s32 %s121, 1
      %p125 = scmp.eq.s32.totalorder %s19, 1
      %p126 = scmp.ne.s32.totalorder %s121, %s123
      %p127 = scmp.eq.s32.totalorder %s19, 0
      %p128 = por %p126, %p127
      %p129 = scmp.ne.s32.totalorder %s121, %s123
      %p130 = scmp.eq.s32.totalorder %s24, 1
      %p131 = por %p129, %p130
      %p132 = scmp.ne.s32.totalorder %s123, %s124
      %p133 = scmp.eq.s32.totalorder %s24, 0
      %p134 = por %p132, %p133
      %p135 = scmp.ne.s32.totalorder %s123, %s124
      %p136 = scmp.eq.s32.totalorder %s25, 1
      %p137 = por %p135, %p136
      %p139 = scmp.ne.s32.totalorder %s124, %s138
      %p140 = scmp.eq.s32.totalorder %s25, 0
      %p141 = por %p139, %p140
      %s142 = ssub.s32 %s26, %s38
      %s143 = ssub.s32 %s27, %s34
      %s144 = sor.u32 %s142, %s143
      %p145 = scmp.eq.s32.totalorder %s144, 0
      %s147 = sadd.s32 %s146, 1
      %s148 = scalar_select %p145, %s146, %s147
      %p151 = pneg %p145
      %p152 = scmp.eq.s32.totalorder %s19, 1
      %p153 = por %p151, %p152
      %p154 = scmp.ne.s32.totalorder %s146, %s149
      %p155 = scmp.eq.s32.totalorder %s19, 0
      %p156 = por %p154, %p155
      %p157 = scmp.ne.s32.totalorder %s146, %s149
      %p158 = scmp.eq.s32.totalorder %s24, 1
      %p159 = por %p157, %p158
      %p160 = scmp.ne.s32.totalorder %s149, %s150
      %p161 = scmp.eq.s32.totalorder %s24, 0
      %p162 = por %p160, %p161
      %p163 = scmp.ne.s32.totalorder %s149, %s150
      %p164 = scmp.eq.s32.totalorder %s25, 1
      %p165 = por %p163, %p164
      %p167 = scmp.ne.s32.totalorder %s150, %s166
      %p168 = scmp.eq.s32.totalorder %s25, 0
      %p169 = por %p167, %p168
      %p170 = scmp.le.s32.totalorder 1, %s19
      %p171 = scmp.lt.s32.totalorder %s19, 3
      %p172 = pnand %p170, %p171
      %p173 = pneg %p172
      // Predicated region
      $region9: #{tpu_custom_call.1} parent=5 // pred_check
        _
      $region10: #{tpu_custom_call.1} parent=5 // pred_check_branch
        %175 = sbr.rel (%p172) target = $region12
      $region11: #{tpu_custom_call.1} parent=5 // pred_region
        %s176 = ssub.s32 %s19, 1
        // Predicated region
        $region13: #{tpu_custom_call.1} parent=11 // pred_check
          %p177 = pneg %p134
        $region14: #{tpu_custom_call.1} parent=11 // pred_check_branch
          %179 = sbr.rel (%p177) target = $region16
        $region15: #{tpu_custom_call.1} parent=11 // pred_region
          _
        $region16: #{tpu_custom_call.1} parent=11 // pred_fallthru
          _
      $region12: #{tpu_custom_call.1} parent=5 // pred_fallthru
        _
      %p180 = scmp.lt.s32.totalorder %s19, 2
      // Predicated region
      $region17: #{tpu_custom_call.1} parent=5 // pred_check
        %p181 = pneg %p180
      $region18: #{tpu_custom_call.1} parent=5 // pred_check_branch
        %183 = sbr.rel (%p181) target = $region20
      $region19: #{tpu_custom_call.1} parent=5 // pred_region
        // Predicated region
        $region21: #{tpu_custom_call.1} parent=19 // pred_check
          %p184 = pneg %p51
        $region22: #{tpu_custom_call.1} parent=19 // pred_check_branch
          %186 = sbr.rel (%p184) target = $region24
        $region23: #{tpu_custom_call.1} parent=19 // pred_region
          %s187 = sand.u32 %s41, 1
          %s188 = scalar_lea.sflag [#allocation3], %s187
          %s189 = sand.u32 %s41, 1
          %s190 = smul.addr %s189, 16
          %s191 = scalar_lea.vmem [#allocation2], %s190
          %s193 = ssub.s32 256, 256
          %194 = vsyncadd %s188, %s193
          %s195 = smul.addr %s26, 2
          %s196 = smul.addr %s195, 128
          %s197 = scalar_lea.hbm %s0, %s196
          %s199 = sshll.u32 %s191, 4
          %s200 = int_to_ptr.vmem [resolvable:$true] %s199
          %202 = dma.hbm_to_vmem [thread:$0]  %s197, 256, %s200, %s188
        $region24: #{tpu_custom_call.1} parent=19 // pred_fallthru
          _
        // Predicated region
        $region25: #{tpu_custom_call.1} parent=19 // pred_check
          %p203 = pneg %p79
        $region26: #{tpu_custom_call.1} parent=19 // pred_check_branch
          %205 = sbr.rel (%p203) target = $region28
        $region27: #{tpu_custom_call.1} parent=19 // pred_region
          %s206 = sand.u32 %s19, 1
          %s207 = scalar_lea.sflag [#allocation6], %s206
          %s208 = sand.u32 %s69, 1
          %s209 = smul.addr %s208, 512
          %s210 = scalar_lea.vmem [#allocation5], %s209
          %s211 = smul.u32 2, %s27
          %s213 = ssub.s32 8192, 8192
          %214 = vsyncadd %s207, %s213
          %s215 = smul.addr %s26, 64
          %s216 = sadd.s32 %s211, %s215
          %s217 = smul.addr %s216, 128
          %s218 = scalar_lea.hbm %s1, %s217
          %s219 = sshll.u32 %s210, 4
          %s220 = int_to_ptr.vmem [resolvable:$true] %s219
          %225 = dma.hbm_to_vmem [thread:$0]  %s218, 8192, %s220, %s207, 256, 256, 16
        $region28: #{tpu_custom_call.1} parent=19 // pred_fallthru
          _
        // Predicated region
        $region29: #{tpu_custom_call.1} parent=19 // pred_check
          %p226 = pneg %p107
        $region30: #{tpu_custom_call.1} parent=19 // pred_check_branch
          %228 = sbr.rel (%p226) target = $region32
        $region31: #{tpu_custom_call.1} parent=19 // pred_region
          %s229 = sand.u32 %s19, 1
          %s230 = scalar_lea.sflag [#allocation6], %s229
          %s231 = sand.u32 %s97, 1
          %s232 = smul.addr %s231, 16
          %s233 = scalar_lea.vmem [#allocation7], %s232
          %s234 = smul.u32 2, %s27
          %s236 = ssub.s32 256, 256
          %237 = vsyncadd %s230, %s236
          %s238 = smul.addr %s26, 2
          %s239 = sadd.s32 %s234, %s238
          %s240 = smul.addr %s239, 128
          %s241 = scalar_lea.hbm %s2, %s240
          %s243 = sshll.u32 %s233, 4
          %s244 = int_to_ptr.vmem [resolvable:$true] %s243
          %246 = dma.hbm_to_vmem [thread:$0]  %s241, 256, %s244, %s230
        $region32: #{tpu_custom_call.1} parent=19 // pred_fallthru
          _
      $region20: #{tpu_custom_call.1} parent=5 // pred_fallthru
        _
      %p247 = scmp.le.s32.totalorder 1, %s19
      %p248 = scmp.lt.s32.totalorder %s19, 3
      %p249 = pnand %p247, %p248
      %p250 = pneg %p249
      // Predicated region
      $region33: #{tpu_custom_call.1} parent=5 // pred_check
        _
      $region34: #{tpu_custom_call.1} parent=5 // pred_check_branch
        %252 = sbr.rel (%p249) target = $region36
      $region35: #{tpu_custom_call.1} parent=5 // pred_region
        %s253 = ssub.s32 %s19, 1
        %s254 = sand.u32 %s44, 1
        %s255 = scalar_lea.sflag [#allocation3], %s254
        %s256 = sand.u32 %s44, 1
        %s257 = smul.addr %s256, 16
        %s258 = scalar_lea.vmem [#allocation2], %s257
        // Predicated region
        $region37: #{tpu_custom_call.1} parent=35 // pred_check
          %p259 = pneg %p57
        $region38: #{tpu_custom_call.1} parent=35 // pred_check_branch
          %261 = sbr.rel (%p259) target = $region40
        $region39: #{tpu_custom_call.1} parent=35 // pred_region
          %262 = dma.done %s255, 256
        $region40: #{tpu_custom_call.1} parent=35 // pred_fallthru
          _
        %s263 = sand.u32 %s24, 1
        %s264 = scalar_lea.sflag [#allocation6], %s263
        %s265 = sand.u32 %s72, 1
        %s266 = smul.addr %s265, 512
        %s267 = scalar_lea.vmem [#allocation5], %s266
        // Predicated region
        $region41: #{tpu_custom_call.1} parent=35 // pred_check
          %p268 = pneg %p85
        $region42: #{tpu_custom_call.1} parent=35 // pred_check_branch
          %270 = sbr.rel (%p268) target = $region44
        $region43: #{tpu_custom_call.1} parent=35 // pred_region
          %271 = dma.done %s264, 8192
        $region44: #{tpu_custom_call.1} parent=35 // pred_fallthru
          _
        %s272 = sand.u32 %s24, 1
        %s273 = scalar_lea.sflag [#allocation6], %s272
        %s274 = sand.u32 %s100, 1
        %s275 = smul.addr %s274, 16
        %s276 = scalar_lea.vmem [#allocation7], %s275
        // Predicated region
        $region45: #{tpu_custom_call.1} parent=35 // pred_check
          %p277 = pneg %p113
        $region46: #{tpu_custom_call.1} parent=35 // pred_check_branch
          %279 = sbr.rel (%p277) target = $region48
        $region47: #{tpu_custom_call.1} parent=35 // pred_region
          %280 = dma.done %s273, 256
        $region48: #{tpu_custom_call.1} parent=35 // pred_fallthru
          _
        %s281 = sand.u32 %s44, 1
        %s282 = scalar_lea.sflag [#allocation3], %s281
        %s283 = sand.u32 %s44, 1
        %s284 = smul.addr %s283, 16
        %s285 = scalar_lea.vmem [#allocation2], %s284
        %p286 = pneg %p57
        %p287 = pneg %p54
        %s288 = sand.u32 %s24, 1
        %s289 = scalar_lea.sflag [#allocation6], %s288
        %s290 = sand.u32 %s72, 1
        %s291 = smul.addr %s290, 512
        %s292 = scalar_lea.vmem [#allocation5], %s291
        %p293 = pneg %p85
        %p294 = pneg %p82
        %s295 = sand.u32 %s24, 1
        %s296 = scalar_lea.sflag [#allocation6], %s295
        %s297 = sand.u32 %s100, 1
        %s298 = smul.addr %s297, 16
        %s299 = scalar_lea.vmem [#allocation7], %s298
        %p300 = pneg %p113
        %p301 = pneg %p110
        %p302 = pneg %p134
        %p303 = pneg %p131
        %p304 = pneg %p162
        %p305 = pneg %p159
        %s306 = sand.u32 %s149, 1
        %s307 = scalar_lea.sflag [#allocation4], %s306
        %s308 = sand.u32 %s149, 1
        %s309 = smul.addr %s308, 16
        %s310 = scalar_lea.vmem [#allocation8], %s309
        %s311 = smul.u32 2, %s29
        %s312 = smul.u32 2, %s29
        %s313 = smul.u32 2, %s29
        %v314 = vld [vmem:[%s258] sm:$0xff]
        %v315 = vld [vmem:[%s258 + $0x8] sm:$0xff]
        %v316 = vld [vmem:[%s267] sm:$0xff]
        %v317 = vld [vmem:[%s267 + $0x8] sm:$0xff]
        %v318 = vld [vmem:[%s267 + $0x10] sm:$0xff]
        %v319 = vld [vmem:[%s267 + $0x18] sm:$0xff]
        %v320 = vld [vmem:[%s267 + $0x20] sm:$0xff]
        %v321 = vld [vmem:[%s267 + $0x28] sm:$0xff]
        %v322 = vld [vmem:[%s267 + $0x30] sm:$0xff]
        %v323 = vld [vmem:[%s267 + $0x38] sm:$0xff]
        %v324 = vld [vmem:[%s267 + $0x40] sm:$0xff]
        %v325 = vld [vmem:[%s267 + $0x48] sm:$0xff]
        %v326 = vld [vmem:[%s267 + $0x50] sm:$0xff]
        %v327 = vld [vmem:[%s267 + $0x58] sm:$0xff]
        %v328 = vld [vmem:[%s267 + $0x60] sm:$0xff]
        %v329 = vld [vmem:[%s267 + $0x68] sm:$0xff]
        %v330 = vld [vmem:[%s267 + $0x70] sm:$0xff]
        %v331 = vld [vmem:[%s267 + $0x78] sm:$0xff]
        %v332 = vld [vmem:[%s267 + $0x80] sm:$0xff]
        %v333 = vld [vmem:[%s267 + $0x88] sm:$0xff]
        %v334 = vld [vmem:[%s267 + $0x90] sm:$0xff]
        %v335 = vld [vmem:[%s267 + $0x98] sm:$0xff]
        %v336 = vld [vmem:[%s267 + $0xa0] sm:$0xff]
        %v337 = vld [vmem:[%s267 + $0xa8] sm:$0xff]
        %v338 = vld [vmem:[%s267 + $0xb0] sm:$0xff]
        %v339 = vld [vmem:[%s267 + $0xb8] sm:$0xff]
        %v340 = vld [vmem:[%s267 + $0xc0] sm:$0xff]
        %v341 = vld [vmem:[%s267 + $0xc8] sm:$0xff]
        %v342 = vld [vmem:[%s267 + $0xd0] sm:$0xff]
        %v343 = vld [vmem:[%s267 + $0xd8] sm:$0xff]
        %v344 = vld [vmem:[%s267 + $0xe0] sm:$0xff]
        %v345 = vld [vmem:[%s267 + $0xe8] sm:$0xff]
        %v346 = vld [vmem:[%s267 + $0xf0] sm:$0xff]
        %v347 = vld [vmem:[%s267 + $0xf8] sm:$0xff]
        %v348 = vld [vmem:[%s267 + $0x100] sm:$0xff]
        %v349 = vld [vmem:[%s267 + $0x108] sm:$0xff]
        %v350 = vld [vmem:[%s267 + $0x110] sm:$0xff]
        %v351 = vld [vmem:[%s267 + $0x118] sm:$0xff]
        %v352 = vld [vmem:[%s267 + $0x120] sm:$0xff]
        %v353 = vld [vmem:[%s267 + $0x128] sm:$0xff]
        %v354 = vld [vmem:[%s267 + $0x130] sm:$0xff]
        %v355 = vld [vmem:[%s267 + $0x138] sm:$0xff]
        %v356 = vld [vmem:[%s267 + $0x140] sm:$0xff]
        %v357 = vld [vmem:[%s267 + $0x148] sm:$0xff]
        %v358 = vld [vmem:[%s267 + $0x150] sm:$0xff]
        %v359 = vld [vmem:[%s267 + $0x158] sm:$0xff]
        %v360 = vld [vmem:[%s267 + $0x160] sm:$0xff]
        %v361 = vld [vmem:[%s267 + $0x168] sm:$0xff]
        %v362 = vld [vmem:[%s267 + $0x170] sm:$0xff]
        %v363 = vld [vmem:[%s267 + $0x178] sm:$0xff]
        %v364 = vld [vmem:[%s267 + $0x180] sm:$0xff]
        %v365 = vld [vmem:[%s267 + $0x188] sm:$0xff]
        %v366 = vld [vmem:[%s267 + $0x190] sm:$0xff]
        %v367 = vld [vmem:[%s267 + $0x198] sm:$0xff]
        %v368 = vld [vmem:[%s267 + $0x1a0] sm:$0xff]
        %v369 = vld [vmem:[%s267 + $0x1a8] sm:$0xff]
        %v370 = vld [vmem:[%s267 + $0x1b0] sm:$0xff]
        %v371 = vld [vmem:[%s267 + $0x1b8] sm:$0xff]
        %v372 = vld [vmem:[%s267 + $0x1c0] sm:$0xff]
        %v373 = vld [vmem:[%s267 + $0x1c8] sm:$0xff]
        %v374 = vld [vmem:[%s267 + $0x1d0] sm:$0xff]
        %v375 = vld [vmem:[%s267 + $0x1d8] sm:$0xff]
        %v376 = vld [vmem:[%s267 + $0x1e0] sm:$0xff]
        %v377 = vld [vmem:[%s267 + $0x1e8] sm:$0xff]
        %v378 = vld [vmem:[%s267 + $0x1f0] sm:$0xff]
        %v379 = vld [vmem:[%s267 + $0x1f8] sm:$0xff]
        %v380 = vld [vmem:[%s3] sm:$0xff]
        %382 = vset.pattern.permute.xlu0 0
        %383 = vperm.xlu0 %382, %v380
        %v384 = vpop.permute.xlu0 %383
        %386 = vmatprep.subr.mxu0 %v317
        %387 = vmatpush1.msra.mxu0 %v316
        %388 = vmatprep.subr.mxu0 %v319
        %389 = vmatpush1.msra.mxu0 %v318
        %390 = vmatprep.subr.mxu0 %v321
        %391 = vmatpush1.msra.mxu0 %v320
        %392 = vmatprep.subr.mxu0 %v323
        %393 = vmatpush1.msra.mxu0 %v322
        %394 = vmatprep.subr.mxu0 %v325
        %395 = vmatpush1.msra.mxu0 %v324
        %396 = vmatprep.subr.mxu0 %v327
        %397 = vmatpush1.msra.mxu0 %v326
        %398 = vmatprep.subr.mxu0 %v329
        %399 = vmatpush1.msra.mxu0 %v328
        %400 = vmatprep.subr.mxu0 %v331
        %401 = vmatpush1.msra.mxu0 %v330
        %402 = vmatprep.subr.mxu0 %v333
        %403 = vmatpush1.msra.mxu0 %v332
        %404 = vmatprep.subr.mxu0 %v335
        %405 = vmatpush1.msra.mxu0 %v334
        %406 = vmatprep.subr.mxu0 %v337
        %407 = vmatpush1.msra.mxu0 %v336
        %408 = vmatprep.subr.mxu0 %v339
        %409 = vmatpush1.msra.mxu0 %v338
        %410 = vmatprep.subr.mxu0 %v341
        %411 = vmatpush1.msra.mxu0 %v340
        %412 = vmatprep.subr.mxu0 %v343
        %413 = vmatpush1.msra.mxu0 %v342
        %414 = vmatprep.subr.mxu0 %v345
        %415 = vmatpush1.msra.mxu0 %v344
        %416 = vmatprep.subr.mxu0 %v347
        %417 = vmatpush1.msra.mxu0 %v346
        %418 = vmatprep.subr.mxu0 %v349
        %419 = vmatpush1.msra.mxu0 %v348
        %420 = vmatprep.subr.mxu0 %v351
        %421 = vmatpush1.msra.mxu0 %v350
        %422 = vmatprep.subr.mxu0 %v353
        %423 = vmatpush1.msra.mxu0 %v352
        %424 = vmatprep.subr.mxu0 %v355
        %425 = vmatpush1.msra.mxu0 %v354
        %426 = vmatprep.subr.mxu0 %v357
        %427 = vmatpush1.msra.mxu0 %v356
        %428 = vmatprep.subr.mxu0 %v359
        %429 = vmatpush1.msra.mxu0 %v358
        %430 = vmatprep.subr.mxu0 %v361
        %431 = vmatpush1.msra.mxu0 %v360
        %432 = vmatprep.subr.mxu0 %v363
        %433 = vmatpush1.msra.mxu0 %v362
        %434 = vmatprep.subr.mxu0 %v365
        %435 = vmatpush1.msra.mxu0 %v364
        %436 = vmatprep.subr.mxu0 %v367
        %437 = vmatpush1.msra.mxu0 %v366
        %438 = vmatprep.subr.mxu0 %v369
        %439 = vmatpush1.msra.mxu0 %v368
        %440 = vmatprep.subr.mxu0 %v371
        %441 = vmatpush1.msra.mxu0 %v370
        %442 = vmatprep.subr.mxu0 %v373
        %443 = vmatpush1.msra.mxu0 %v372
        %444 = vmatprep.subr.mxu0 %v375
        %445 = vmatpush1.msra.mxu0 %v374
        %446 = vmatprep.subr.mxu0 %v377
        %447 = vmatpush1.msra.mxu0 %v376
        %448 = vmatprep.subr.mxu0 %v379
        %449 = vmatpush1.msra.mxu0 %v378
        %450 = vmatprep.mubr.f32.mxu0 %v315
        %451 = vmatmul.mubr.f32.gmra.mrb[0].mxu0 %v314
        %v452 = vpop.f32.mrb[0].mxu0
        %v453 = vadd.f32 %v384, %v452
        %v454 = vpop.f32.mrb[0].mxu0
        %v455 = vadd.f32 %v384, %v454
        %456 = vdwg.mxu0
        %v457 = vmax.f32 %v453, 0.0
        %v458 = vmax.f32 %v455, 0.0
        %v459 = vld [vmem:[%s276] sm:$0xff]
        %v460 = vld [vmem:[%s276 + $0x8] sm:$0xff]
        %v461 = vadd.f32 %v457, %v459
        %v462 = vadd.f32 %v458, %v460
        %463 = vst [vmem:[%s310] sm:$0xff] %v461
        %464 = vst [vmem:[%s310 + $0x8] sm:$0xff] %v462
        %s465 = sand.u32 %s149, 1
        %s466 = scalar_lea.sflag [#allocation4], %s465
        %s467 = sand.u32 %s149, 1
        %s468 = smul.addr %s467, 16
        %s469 = scalar_lea.vmem [#allocation8], %s468
        // Predicated region
        $region49: #{tpu_custom_call.1} parent=35 // pred_check
          %p470 = pneg %p159
        $region50: #{tpu_custom_call.1} parent=35 // pred_check_branch
          %472 = sbr.rel (%p470) target = $region52
        $region51: #{tpu_custom_call.1} parent=35 // pred_region
          %s473 = smul.u32 2, %s29
          %s475 = ssub.s32 256, 256
          %476 = vsyncadd %s466, %s475
          %s477 = smul.addr %s28, 2
          %s478 = sadd.s32 %s473, %s477
          %s479 = smul.addr %s478, 128
          %s480 = scalar_lea.hbm %s4, %s479
          %s482 = sshll.u32 %s469, 4
          %s483 = int_to_ptr.vmem [resolvable:$true] %s482
          %485 = dma.vmem_to_hbm [thread:$0]  %s483, 256, %s480, %s466
        $region52: #{tpu_custom_call.1} parent=35 // pred_fallthru
          _
      $region36: #{tpu_custom_call.1} parent=5 // pred_fallthru
        _
      %p486 = scmp.le.s32.totalorder 2, %s19
      // Predicated region
      $region53: #{tpu_custom_call.1} parent=5 // pred_check
        %p487 = pneg %p486
      $region54: #{tpu_custom_call.1} parent=5 // pred_check_branch
        %489 = sbr.rel (%p487) target = $region56
      $region55: #{tpu_custom_call.1} parent=5 // pred_region
        %s490 = ssub.s32 %s19, 2
        // Predicated region
        $region57: #{tpu_custom_call.1} parent=55 // pred_check
          %p491 = pneg %p165
        $region58: #{tpu_custom_call.1} parent=55 // pred_check_branch
          %493 = sbr.rel (%p491) target = $region60
        $region59: #{tpu_custom_call.1} parent=55 // pred_region
          %s494 = sand.u32 %s150, 1
          %s495 = scalar_lea.sflag [#allocation4], %s494
          %s496 = sand.u32 %s150, 1
          %s497 = smul.addr %s496, 16
          %s498 = scalar_lea.vmem [#allocation8], %s497
          %499 = dma.done %s495, 256
        $region60: #{tpu_custom_call.1} parent=55 // pred_fallthru
          _
      $region56: #{tpu_custom_call.1} parent=5 // pred_fallthru
        _
    $region6: #{tpu_custom_call.1} parent=1 // loop_footer
      %s23 = sadd.s32 1, %s19
    $region7: #{tpu_custom_call.1} parent=1 // loop_footer_branch
      %18 = sbr.rel target = $region3
    $region8: #{tpu_custom_call.1} parent=1 // loop_exit
      _
    %500 = vsyncpa [#allocation3], 1
    %s501 = scalar_lea.sflag [#allocation3], 1
    %502 = vsyncpa %s501, 1
    %503 = vsyncpa [#allocation6], 1
    %s504 = scalar_lea.sflag [#allocation6], 1
    %505 = vsyncpa %s504, 1
    %506 = vsyncpa [#allocation4], 1
    %s507 = scalar_lea.sflag [#allocation4], 1
    %508 = vsyncpa %s507, 1

</llo_original>
